<compile_context>
chip_gen: v6e
topology: v6e:2x2x1
jax: 0.10.0
libtpu: 0.0.40
codegen_flags: <defaults>
</compile_context>

<pallas_src>
import functools

import jax
import jax.numpy as jnp
from jax import lax
from jax.experimental import pallas as pl
from jax.experimental.pallas import tpu as pltpu


def _rmsnorm_kernel(x_ref, w_ref, o_ref, *, eps, inv_hidden, weight_in_f32):
    # x_ref: (tile_rows, hidden_p), w_ref: (1, hidden_p)
    input_dtype = x_ref.dtype
    x = x_ref[...].astype(jnp.float32)                         # .to(torch.float32)
    # sum * (1/true_hidden) == mean over the true hidden size; zero-padded
    # lanes contribute nothing to the sum, so padding keeps this exact.
    variance = jnp.sum(x * x, axis=-1, keepdims=True) * inv_hidden
    x = x * lax.rsqrt(variance + eps)                          # * rsqrt(var + eps)
    if weight_in_f32:
        # Opt-in (useful on v5e: no native bf16 VALU): multiply in f32, cast once.
        o_ref[...] = (w_ref[...].astype(jnp.float32) * x).astype(o_ref.dtype)
    else:
        y = x.astype(input_dtype)                              # .to(input_dtype)
        o_ref[...] = (w_ref[...] * y).astype(o_ref.dtype)      # weight * hidden_states


def _sublane(dtype):
    # sublane packing: 8 for 4-byte, 16 for 2-byte, 32 for 1-byte dtypes.
    return max(8, 32 // jnp.dtype(dtype).itemsize)


def _tpu_budgets():
    """Generation-aware (tile_budget_bytes, vmem_limit_bytes, num_tensorcores)."""
    vmem = None
    try:
        info = pltpu.get_tpu_info()
        vmem = getattr(info, "vmem_capacity_bytes", None)
    except Exception:
        vmem = None
    if not vmem:
        vmem = 64 * 1024 * 1024                   # unknown: assume smallest (v7x) part
    if vmem >= 100 * 1024 * 1024:
        # v5e / v6e: 128 MiB physical VMEM, 1 TensorCore per chip.
        return 80 * 1024 * 1024, 100 * 1024 * 1024, 1
    # v7x: 64 MiB physical VMEM per TensorCore, 2 TensorCores per chip.
    return 20 * 1024 * 1024, 40 * 1024 * 1024, 2


def _pick_tile_rows(rows, hidden, in_dtype, out_dtype, tile_budget, num_cores):
    """Largest sublane-aligned row tile that fits the VMEM tile budget, while
    keeping enough grid steps for the software pipeline (and for megacore)."""
    in_b = jnp.dtype(in_dtype).itemsize
    out_b = jnp.dtype(out_dtype).itemsize
    sub = max(_sublane(in_dtype), _sublane(out_dtype))

    # Per-row VMEM footprint: double-buffered input + output tiles plus f32
    # intermediates (upcast + product can be live together: ~12 B/elem).
    per_row = hidden * (2 * in_b + 2 * out_b + 12)

    nblk = -(-rows // sub)                        # rows in sublane-sized blocks
    tb = max(1, (tile_budget // max(per_row, 1)) // sub)   # budget alone; no row cap
    tb = min(tb, nblk)

    # Keep the pipeline busy: >= 3 steps on 1-TC parts; >= 4 (even when
    # possible) on 2-TC parts so each core gets >= 2 double-buffered blocks.
    min_steps = 4 if num_cores >= 2 else 3
    if nblk >= min_steps:
        tb = min(tb, max(1, (nblk - 1) // (min_steps - 1)))
        if num_cores >= 2:
            steps = -(-nblk // tb)
            for _ in range(16):                   # best-effort even step count
                if steps % 2 == 0 or tb <= 1:
                    break
                tb -= 1
                steps = -(-nblk // tb)
    return tb * sub


def time_moe_rmsnorm(hidden_states, weight, eps=1e-6, *, tile_rows=None,
                     weight_in_f32=False):
    """hidden_states: (..., hidden); weight: (hidden,)."""
    orig_shape = hidden_states.shape
    hidden = orig_shape[-1]
    x2d = hidden_states.reshape(-1, hidden)
    rows = x2d.shape[0]

    # Output dtype follows promotion of (weight.dtype, input dtype) — same as torch.
    out_dtype = jnp.promote_types(weight.dtype, hidden_states.dtype)

    # Lane-dense output stores: pad hidden to a multiple of 128 when needed.
    pad = (-hidden) % 128
    hidden_p = hidden + pad
    if pad:
        x2d = jnp.pad(x2d, ((0, 0), (0, pad)))
        w = jnp.pad(weight, (0, pad))
    else:
        w = weight
    w2d = w.reshape(1, hidden_p)

    tile_budget, vmem_limit, num_cores = _tpu_budgets()
    if tile_rows is None:
        tile_rows = _pick_tile_rows(rows, hidden_p, x2d.dtype, out_dtype,
                                    tile_budget, num_cores)

    kernel = functools.partial(_rmsnorm_kernel, eps=eps,
                               inv_hidden=1.0 / hidden,
                               weight_in_f32=weight_in_f32)
    out = pl.pallas_call(
        kernel,
        out_shape=jax.ShapeDtypeStruct((rows, hidden_p), out_dtype),
        grid_spec=pltpu.PrefetchScalarGridSpec(
            num_scalar_prefetch=0,
            grid=(pl.cdiv(rows, tile_rows),),
            in_specs=[
                pl.BlockSpec((tile_rows, hidden_p), lambda i: (i, 0)),
                # Constant index_map: weight tile is DMA'd once, not per step.
                pl.BlockSpec((1, hidden_p), lambda i: (0, 0)),
            ],
            out_specs=pl.BlockSpec((tile_rows, hidden_p), lambda i: (i, 0)),
        ),
        compiler_params=pltpu.CompilerParams(
            dimension_semantics=("parallel",),
            vmem_limit_bytes=vmem_limit,
        ),
    )(x2d, w2d)

    if pad:
        out = out[:, :hidden]
    return out.reshape(orig_shape)


def rmsnorm_ref(hidden_states, weight, eps=1e-6):
    input_dtype = hidden_states.dtype
    x = hidden_states.astype(jnp.float32)
    variance = jnp.mean(x * x, axis=-1, keepdims=True)
    x = x * lax.rsqrt(variance + eps)
    return weight * x.astype(input_dtype)


if __name__ == "__main__":
    eps = 1e-6
    key = jax.random.PRNGKey(0)

    # Primary case (exercises the hidden-padding / lane-dense path): hidden=32.
    batch, seq, hidden = 2, 8, 32
    x = jax.random.normal(key, (batch, seq, hidden), dtype=jnp.float32)
    weight = jnp.ones((hidden,), dtype=jnp.float32)      # init as in __init__
    out = jax.block_until_ready(time_moe_rmsnorm(x, weight, eps))
    ref = rmsnorm_ref(x, weight, eps)
    assert out.shape == ref.shape, (out.shape, ref.shape)
    assert out.dtype == ref.dtype, (out.dtype, ref.dtype)
    assert jnp.allclose(out, ref, atol=1e-5, rtol=1e-5), "mismatch vs reference (h=32)"

    # Secondary case (no padding, multi-row-block path): hidden=128.
    key2 = jax.random.PRNGKey(0)
    x2 = jax.random.normal(key2, (4, 64, 128), dtype=jnp.float32)
    w2 = jnp.ones((128,), dtype=jnp.float32)
    out2 = jax.block_until_ready(time_moe_rmsnorm(x2, w2, eps))
    ref2 = rmsnorm_ref(x2, w2, eps)
    assert jnp.allclose(out2, ref2, atol=1e-5, rtol=1e-5), "mismatch vs reference (h=128)"

    print("KERNEL_OK")
</pallas_src>

<mosaic_0001>
module attributes {stable_mosaic.version = 11 : i64} {
  func.func @_rmsnorm_kernel(%arg0: i32, %arg1: memref<16x128xf32, #tpu.memory_space<vmem>>, %arg2: memref<1x128xf32, #tpu.memory_space<vmem>>, %arg3: memref<16x128xf32, #tpu.memory_space<vmem>>) attributes {dimension_semantics = [#tpu.dimension_semantics<parallel>], iteration_bounds = array<i64: 1>, scalar_prefetch = 0 : i64, scratch_operands = 0 : i64, tpu.core_type = #tpu.core_type<tc>, window_params = [{transform_indices = @transform_0, window_bounds = array<i64: 16, 128>}, {pipeline_mode = #tpu.pipeline_mode<synchronous>, transform_indices = @transform_1, window_bounds = array<i64: 1, 128>}, {transform_indices = @transform_2, window_bounds = array<i64: 16, 128>}]} {
    %c0 = arith.constant 0 : index
    %c0_0 = arith.constant 0 : index
    %0 = vector.load %arg1[%c0, %c0_0] : memref<16x128xf32, #tpu.memory_space<vmem>>, vector<16x128xf32>
    %1 = arith.mulf %0, %0 : vector<16x128xf32>
    %cst = arith.constant dense<0.000000e+00> : vector<16xf32>
    %2 = vector.multi_reduction <add>, %1, %cst [1] : vector<16x128xf32> to vector<16xf32>
    %3 = vector.shape_cast %2 : vector<16xf32> to vector<16x1xf32>
    %cst_1 = arith.constant 3.125000e-02 : f32
    %4 = vector.broadcast %cst_1 : f32 to vector<16x1xf32>
    %5 = arith.mulf %3, %4 : vector<16x1xf32>
    %cst_2 = arith.constant 9.99999997E-7 : f32
    %6 = vector.broadcast %cst_2 : f32 to vector<16x1xf32>
    %7 = arith.addf %5, %6 : vector<16x1xf32>
    %8 = math.rsqrt %7 : vector<16x1xf32>
    %9 = vector.broadcast %8 : vector<16x1xf32> to vector<16x128xf32>
    %10 = arith.mulf %0, %9 : vector<16x128xf32>
    %c0_3 = arith.constant 0 : index
    %c0_4 = arith.constant 0 : index
    %11 = vector.load %arg2[%c0_3, %c0_4] : memref<1x128xf32, #tpu.memory_space<vmem>>, vector<1x128xf32>
    %12 = vector.broadcast %11 : vector<1x128xf32> to vector<16x128xf32>
    %13 = arith.mulf %12, %10 : vector<16x128xf32>
    %c0_5 = arith.constant 0 : index
    %c0_6 = arith.constant 0 : index
    %14 = vector.load %arg3[%c0_5, %c0_6] : memref<16x128xf32, #tpu.memory_space<vmem>>, vector<16x128xf32>
    tpu.vector_store %arg3[%c0_5, %c0_6], %13 {strides = array<i32>} : memref<16x128xf32, #tpu.memory_space<vmem>>, vector<16x128xf32>,
    return
  }
  func.func @transform_0(%arg0: i32) -> (i32, i32) {
    %c0_i32 = arith.constant 0 : i32
    %c0_i32_0 = arith.constant 0 : i32
    return %arg0, %c0_i32 : i32, i32
  }
  func.func @transform_1(%arg0: i32) -> (i32, i32) {
    %c0_i32 = arith.constant 0 : i32
    %c0_i32_0 = arith.constant 0 : i32
    %c0_i32_1 = arith.constant 0 : i32
    return %c0_i32, %c0_i32_0 : i32, i32
  }
  func.func @transform_2(%arg0: i32) -> (i32, i32) {
    %c0_i32 = arith.constant 0 : i32
    %c0_i32_0 = arith.constant 0 : i32
    return %arg0, %c0_i32 : i32, i32
  }
}

</mosaic_0001>

<llo_original>
// kernel: tpu_custom_call.1
$region0: #{tpu_custom_call.1}
  #allocation0 [shape = 'u32[]', space=smem, size = 0x4, offset = 0x4, fixed_abs, tag = 'smem constant byte address 0x4 - core index']
  #allocation1 [shape = 'u32[144,128]{1,0:T(1,128)}', space=vmem, size = 0x12000, scoped, tag = 'internal scratch']
  %s0 = inlined_call_operand.hbm [shape: f32[16,128], index: 0, kind: input, shape index: {}]
  %s1 = inlined_call_operand.vmem [shape: f32[1,128], index: 1, kind: input, shape index: {}]
  %s2 = inlined_call_operand.hbm [shape: f32[16,128], index: 2, kind: output, shape index: {}]
  %s3 = sld [smem:[#allocation0]]
  $region22: #{tpu_custom_call.1} parent=0
    _
  %s5 = ssub.s32 1, %s3
  %s6 = scalar_select 0, %s5, %s3
  $region1: #{tpu_custom_call.1} parent=0
    #allocation2 [shape = 'u8[8192]{0}', space=vmem, size = 0x2000, scoped, tag = 'input window, operand 0, single buffered']
    #allocation3 [shape = 's32[1]{0}', space=sflag, size = 0x4, scoped, tag = 'scoped memory for tpu_custom_call.1']
    #allocation4 [shape = 's32[1]{0}', space=sflag, size = 0x4, scoped, tag = 'scoped memory for tpu_custom_call.1']
    #allocation5 [shape = 'u8[8192]{0}', space=vmem, size = 0x2000, scoped, tag = 'output window, operand 0, single buffered']
    %7 = vsyncpa [#allocation3], 0
    %8 = vsyncpa [#allocation4], 0
    // Predicated region
    $region2: #{tpu_custom_call.1} parent=1 // pred_check
      _
    $region3: #{tpu_custom_call.1} parent=1 // pred_check_branch
      %10 = sbr.rel (0) target = $region5
    $region4: #{tpu_custom_call.1} parent=1 // pred_region
      %s12 = ssub.s32 256, 256
      %13 = vsyncadd [#allocation3], %s12
      %s14 = sshll.u32 [#allocation2], 4
      %s15 = int_to_ptr.vmem [resolvable:$true] %s14
      %20 = dma.hbm_to_vmem [thread:$0]  %s0, 256, %s15, [#allocation3], 128, 128, 8
    $region5: #{tpu_custom_call.1} parent=1 // pred_fallthru
      _
    // Predicated region
    $region6: #{tpu_custom_call.1} parent=1 // pred_check
      _
    $region7: #{tpu_custom_call.1} parent=1 // pred_check_branch
      %22 = sbr.rel (0) target = $region9
    $region8: #{tpu_custom_call.1} parent=1 // pred_region
      _
    $region9: #{tpu_custom_call.1} parent=1 // pred_fallthru
      _
    // Predicated region
    $region10: #{tpu_custom_call.1} parent=1 // pred_check
      _
    $region11: #{tpu_custom_call.1} parent=1 // pred_check_branch
      %24 = sbr.rel (0) target = $region13
    $region12: #{tpu_custom_call.1} parent=1 // pred_region
      %25 = dma.done [#allocation3], 256
    $region13: #{tpu_custom_call.1} parent=1 // pred_fallthru
      _
    %v26 = vld [vmem:[#allocation2] sm:$0xff]
    %v27 = vld [vmem:[#allocation2 + $0x8] sm:$0xff]
    %v28 = vmul.f32 %v26, %v26
    %v29 = vmul.f32 %v27, %v27
    %30 = vadd.xlane.f32.xlu0 %v28
    %v31 = vpop.xlane.xlu0 %30
    %32 = vadd.xlane.f32.xlu0 %v29
    %v33 = vpop.xlane.xlu0 %32
    %v34 = vmul.f32 %v31, 0.03125
    %v35 = vmul.f32 %v33, 0.03125
    %v36 = vadd.f32 %v34, 1e-06
    %v37 = vadd.f32 %v35, 1e-06
    %v38 = vrsqrt.pop %v36
    %v39 = vrsqrt.pop %v37
    %v40 = vmul.f32 %v26, %v38
    %v41 = vmul.f32 %v27, %v39
    %v42 = vld [vmem:[%s1] sm:$0x1]
    %v44 = vlaneseq
    %v45 = vshrl.u32 %v44, 7
    %v46 = vsub.s32 0, %v45
    %v47 = vrot.slane %v42, %v46
    %v49 = vmul.f32 %v47, %v40
    %v50 = vmul.f32 %v47, %v41
    %51 = vst [vmem:[#allocation5] sm:$0xff] %v49
    %52 = vst [vmem:[#allocation5 + $0x8] sm:$0xff] %v50
    // Predicated region
    $region14: #{tpu_custom_call.1} parent=1 // pred_check
      _
    $region15: #{tpu_custom_call.1} parent=1 // pred_check_branch
      %54 = sbr.rel (0) target = $region17
    $region16: #{tpu_custom_call.1} parent=1 // pred_region
      %s56 = ssub.s32 256, 256
      %57 = vsyncadd [#allocation4], %s56
      %s58 = sshll.u32 [#allocation5], 4
      %s59 = int_to_ptr.vmem [resolvable:$true] %s58
      %64 = dma.vmem_to_hbm [thread:$0]  %s59, 256, %s2, [#allocation4], 128, 128, 8
    $region17: #{tpu_custom_call.1} parent=1 // pred_fallthru
      _
    // Predicated region
    $region18: #{tpu_custom_call.1} parent=1 // pred_check
      _
    $region19: #{tpu_custom_call.1} parent=1 // pred_check_branch
      %66 = sbr.rel (0) target = $region21
    $region20: #{tpu_custom_call.1} parent=1 // pred_region
      %67 = dma.done [#allocation4], 256
    $region21: #{tpu_custom_call.1} parent=1 // pred_fallthru
      _
    %68 = vsyncpa [#allocation3], 1
    %69 = vsyncpa [#allocation4], 1

</llo_original>
